<compile_context>
chip_gen: v5e
topology: v5e:2x2
jax: 0.10.0
libtpu: 0.0.40
codegen_flags: <defaults>
</compile_context>

<pallas_src>
import functools

import jax
import jax.numpy as jnp
from jax.experimental import pallas as pl
from jax.experimental.pallas import tpu as pltpu

# Static conv config (matches Conv2d(3, 6, 3, 1, (0, 0), 1))
C_IN, C_OUT, KH, KW = 3, 6, 3, 3
STRIDE, PAD, DILATION = 1, 0, 1


def _conv2d_kernel(x_ref, w_ref, b_ref, o_ref, xpad_ref, *, hw, tap_offsets, nb):
    # x_ref:    (nb, C_IN, HW)           unpadded flattened images (VMEM, auto-pipelined)
    # w_ref:    (KH*KW, C_OUT, C_IN)     per-tap weight matrices
    # b_ref:    (C_OUT, 1)
    # o_ref:    (nb, C_OUT, HW)          lane-dense flattened output slab
    # xpad_ref: (nb, C_IN, HW + halo)    VMEM scratch: image + zeroed halo tail
    halo = tap_offsets[-1]

    # In-kernel halo: zero only the tail, then copy the unpadded block in (VMEM-only traffic,
    # replaces the old host-side jnp.pad HBM pass).
    xpad_ref[:, :, hw:hw + halo] = jnp.zeros((nb, C_IN, halo), dtype=xpad_ref.dtype)
    xpad_ref[:, :, :hw] = x_ref[...]

    w_all = w_ref[...]   # (KH*KW, C_OUT, C_IN) - tiny, loaded once
    bias = b_ref[...]    # (C_OUT, 1), broadcasts over the lane dim

    for img in range(nb):            # nb is small by construction; static unroll
        xp = xpad_ref[img]           # (C_IN, HW + halo)
        acc = None
        for t, off in enumerate(tap_offsets):
            # Tap contribution: (C_OUT, C_IN) @ (C_IN, HW) accumulated in f32.  The unaligned
            # lane shift lowers to an XLU rotate+select that co-issues with the MXU push.
            d = jnp.dot(w_all[t], xp[:, off:off + hw],
                        preferred_element_type=jnp.float32)
            acc = d if acc is None else acc + d
        o_ref[img] = (acc + bias).astype(o_ref.dtype)


def _pick_images_per_block(n, hw):
    """Images per grid step: amortize per-step overhead on single-TC chips, but keep
    >= 2 grid steps when n >= 2 so both v7x TensorCores stay busy."""
    target = max(1, n // 2) if n >= 2 else 1
    # Cap the per-step input block around ~2 MiB so blocks stay VMEM-friendly.
    cap_by_bytes = max(1, (2 * 1024 * 1024) // max(1, C_IN * hw * 4))
    target = min(target, cap_by_bytes)
    nb = 1
    for d in range(1, target + 1):   # largest divisor of n that is <= target
        if n % d == 0:
            nb = d
    return nb


def conv2d_pallas(x, w, b):
    """x: (N, C_IN, H, W) f32, w: (C_OUT, C_IN, KH, KW) f32, b: (C_OUT,) f32 -> (N, C_OUT, oh, ow)."""
    n, c, h, wdt = x.shape
    assert c == C_IN and w.shape == (C_OUT, C_IN, KH, KW) and b.shape == (C_OUT,)
    # The flat-lane tap trick below is only valid for this exact config.
    assert STRIDE == 1 and PAD == 0 and DILATION == 1

    oh = h - (KH - 1)
    ow = wdt - (KW - 1)
    hw = h * wdt

    # Output flat position p = i*W + j (valid for i<oh, j<ow) needs x_flat[p + off] with
    # off = kh*W + kw.  For every VALID p, p + off <= hw - 1, so only cropped positions ever
    # read the zero halo tail.
    tap_offsets = tuple(kh * wdt + kw for kh in range(KH) for kw in range(KW))
    halo = tap_offsets[-1]          # (KH-1)*W + (KW-1)
    hwp = hw + halo

    nb = _pick_images_per_block(n, hw)
    grid_n = n // nb

    # Host-side prep: the NCHW -> (N, C_IN, H*W) reshape is contiguous (free); NO pad pass.
    x_flat = x.reshape(n, C_IN, hw).astype(jnp.float32)
    # w_taps[kh*KW + kw, o, c] = w[o, c, kh, kw]  -> matches tap_offsets ordering.
    w_taps = jnp.transpose(w.astype(jnp.float32), (2, 3, 0, 1)).reshape(KH * KW, C_OUT, C_IN)
    b2 = b.reshape(C_OUT, 1).astype(jnp.float32)

    # VMEM working-set guard (double-buffered in/out blocks + halo scratch).
    lanes_pad = -(-hwp // 128) * 128
    block_bytes = (2 * nb * C_IN * hw * 4
                   + 2 * nb * C_OUT * hw * 4
                   + nb * C_IN * lanes_pad * 4)
    vmem_limit = 32 * 1024 * 1024
    assert block_bytes < vmem_limit - (4 << 20), (
        "whole-image block too big for VMEM; "
        "TODO(synk): switch to halo'd row-strip tiling with manual DMA")

    kernel = functools.partial(_conv2d_kernel, hw=hw, tap_offsets=tap_offsets, nb=nb)
    out_flat = pl.pallas_call(
        kernel,
        out_shape=jax.ShapeDtypeStruct((n, C_OUT, hw), jnp.float32),
        grid_spec=pltpu.PrefetchScalarGridSpec(
            num_scalar_prefetch=0,
            grid=(grid_n,),
            in_specs=[
                pl.BlockSpec((nb, C_IN, hw), lambda i: (i, 0, 0)),
                pl.BlockSpec((KH * KW, C_OUT, C_IN), lambda i: (0, 0, 0)),
                pl.BlockSpec((C_OUT, 1), lambda i: (0, 0)),
            ],
            out_specs=pl.BlockSpec((nb, C_OUT, hw), lambda i: (i, 0, 0)),
            scratch_shapes=[pltpu.VMEM((nb, C_IN, hwp), jnp.float32)],
        ),
        compiler_params=pltpu.CompilerParams(
            dimension_semantics=("parallel",),
            vmem_limit_bytes=vmem_limit),
    )(x_flat, w_taps, b2)

    # Conv is the module's last op: crop the valid (oh, ow) window once in XLA.
    return out_flat.reshape(n, C_OUT, h, wdt)[:, :, :oh, :ow]


def init_params(key):
    # Deterministic init mimicking PyTorch's default (uniform in +/- 1/sqrt(fan_in)).
    kw_key, kb_key = jax.random.split(key)
    fan_in = C_IN * KH * KW
    bound = 1.0 / (fan_in ** 0.5)
    w = jax.random.uniform(kw_key, (C_OUT, C_IN, KH, KW), jnp.float32, -bound, bound)
    b = jax.random.uniform(kb_key, (C_OUT,), jnp.float32, -bound, bound)
    return w, b


if __name__ == "__main__":
    key = jax.random.PRNGKey(0)
    kx, kp = jax.random.split(key)
    x = jax.random.normal(kx, (2, 3, 16, 16), jnp.float32)  # N, C, H, W
    w, b = init_params(kp)

    out = conv2d_pallas(x, w, b)
    out = jax.block_until_ready(out)

    # Cross-check against XLA's conv for correctness.
    ref = jax.lax.conv_general_dilated(
        x, w, window_strides=(STRIDE, STRIDE), padding="VALID",
        dimension_numbers=("NCHW", "OIHW", "NCHW")) + b.reshape(1, C_OUT, 1, 1)
    assert out.shape == (2, 6, 14, 14), out.shape
    assert jnp.allclose(out, ref, atol=1e-5, rtol=1e-5)
    print("KERNEL_OK")
</pallas_src>

<mosaic_0001>
module attributes {stable_mosaic.version = 11 : i64} {
  func.func @_conv2d_kernel(%arg0: i32, %arg1: memref<1x3x256xf32, #tpu.memory_space<vmem>>, %arg2: memref<9x6x3xf32, #tpu.memory_space<vmem>>, %arg3: memref<6x1xf32, #tpu.memory_space<vmem>>, %arg4: memref<1x6x256xf32, #tpu.memory_space<vmem>>, %arg5: memref<1x3x290xf32, #tpu.memory_space<vmem>>) attributes {dimension_semantics = [#tpu.dimension_semantics<parallel>], iteration_bounds = array<i64: 2>, scalar_prefetch = 0 : i64, scratch_operands = 1 : i64, tpu.core_type = #tpu.core_type<tc>, window_params = [{transform_indices = @transform_0, window_bounds = array<i64: 1, 3, 256>}, {pipeline_mode = #tpu.pipeline_mode<synchronous>, transform_indices = @transform_1, window_bounds = array<i64: 9, 6, 3>}, {pipeline_mode = #tpu.pipeline_mode<synchronous>, transform_indices = @transform_2, window_bounds = array<i64: 6, 1>}, {transform_indices = @transform_3, window_bounds = array<i64: 1, 6, 256>}]} {
    %cst = arith.constant 0.000000e+00 : f32
    %0 = vector.broadcast %cst : f32 to vector<1x3x34xf32>
    %c0 = arith.constant 0 : index
    %c0_0 = arith.constant 0 : index
    %c256 = arith.constant 256 : index
    %1 = vector.load %arg5[%c0, %c0_0, %c256] : memref<1x3x290xf32, #tpu.memory_space<vmem>>, vector<1x3x34xf32>
    tpu.vector_store %arg5[%c0, %c0_0, %c256], %0 {strides = array<i32>} : memref<1x3x290xf32, #tpu.memory_space<vmem>>, vector<1x3x34xf32>,
    %c0_1 = arith.constant 0 : index
    %c0_2 = arith.constant 0 : index
    %c0_3 = arith.constant 0 : index
    %2 = vector.load %arg1[%c0_1, %c0_2, %c0_3] : memref<1x3x256xf32, #tpu.memory_space<vmem>>, vector<1x3x256xf32>
    %c0_4 = arith.constant 0 : index
    %c0_5 = arith.constant 0 : index
    %c0_6 = arith.constant 0 : index
    %3 = vector.load %arg5[%c0_4, %c0_5, %c0_6] : memref<1x3x290xf32, #tpu.memory_space<vmem>>, vector<1x3x256xf32>
    tpu.vector_store %arg5[%c0_4, %c0_5, %c0_6], %2 {strides = array<i32>} : memref<1x3x290xf32, #tpu.memory_space<vmem>>, vector<1x3x256xf32>,
    %c0_7 = arith.constant 0 : index
    %c0_8 = arith.constant 0 : index
    %c0_9 = arith.constant 0 : index
    %4 = vector.load %arg2[%c0_7, %c0_8, %c0_9] : memref<9x6x3xf32, #tpu.memory_space<vmem>>, vector<9x6x3xf32>
    %c0_10 = arith.constant 0 : index
    %c0_11 = arith.constant 0 : index
    %5 = vector.load %arg3[%c0_10, %c0_11] : memref<6x1xf32, #tpu.memory_space<vmem>>, vector<6x1xf32>
    %c0_12 = arith.constant 0 : index
    %c0_13 = arith.constant 0 : index
    %c0_14 = arith.constant 0 : index
    %6 = vector.load %arg5[%c0_12, %c0_13, %c0_14] : memref<1x3x290xf32, #tpu.memory_space<vmem>>, vector<1x3x290xf32>
    %7 = vector.shape_cast %6 : vector<1x3x290xf32> to vector<3x290xf32>
    %8 = vector.extract_strided_slice %4 {offsets = [0, 0, 0], sizes = [1, 6, 3], strides = [1, 1, 1]} : vector<9x6x3xf32> to vector<1x6x3xf32>
    %9 = vector.shape_cast %8 : vector<1x6x3xf32> to vector<6x3xf32>
    %10 = vector.extract_strided_slice %7 {offsets = [0, 0], sizes = [3, 256], strides = [1, 1]} : vector<3x290xf32> to vector<3x256xf32>
    %cst_15 = arith.constant dense<0.000000e+00> : vector<6x256xf32>
    %11 = tpu.matmul %9, %10, %cst_15 {dimension_numbers = #tpu.dot_dimension_numbers<[1], [0], [0], [1], [0, 0, 1, 1], [], []>} : vector<6x3xf32>, vector<3x256xf32>, vector<6x256xf32> -> vector<6x256xf32>
    %12 = vector.extract_strided_slice %4 {offsets = [1, 0, 0], sizes = [1, 6, 3], strides = [1, 1, 1]} : vector<9x6x3xf32> to vector<1x6x3xf32>
    %13 = vector.shape_cast %12 : vector<1x6x3xf32> to vector<6x3xf32>
    %14 = vector.extract_strided_slice %7 {offsets = [0, 1], sizes = [3, 256], strides = [1, 1]} : vector<3x290xf32> to vector<3x256xf32>
    %cst_16 = arith.constant dense<0.000000e+00> : vector<6x256xf32>
    %15 = tpu.matmul %13, %14, %cst_16 {dimension_numbers = #tpu.dot_dimension_numbers<[1], [0], [0], [1], [0, 0, 1, 1], [], []>} : vector<6x3xf32>, vector<3x256xf32>, vector<6x256xf32> -> vector<6x256xf32>
    %16 = arith.addf %11, %15 : vector<6x256xf32>
    %17 = vector.extract_strided_slice %4 {offsets = [2, 0, 0], sizes = [1, 6, 3], strides = [1, 1, 1]} : vector<9x6x3xf32> to vector<1x6x3xf32>
    %18 = vector.shape_cast %17 : vector<1x6x3xf32> to vector<6x3xf32>
    %19 = vector.extract_strided_slice %7 {offsets = [0, 2], sizes = [3, 256], strides = [1, 1]} : vector<3x290xf32> to vector<3x256xf32>
    %cst_17 = arith.constant dense<0.000000e+00> : vector<6x256xf32>
    %20 = tpu.matmul %18, %19, %cst_17 {dimension_numbers = #tpu.dot_dimension_numbers<[1], [0], [0], [1], [0, 0, 1, 1], [], []>} : vector<6x3xf32>, vector<3x256xf32>, vector<6x256xf32> -> vector<6x256xf32>
    %21 = arith.addf %16, %20 : vector<6x256xf32>
    %22 = vector.extract_strided_slice %4 {offsets = [3, 0, 0], sizes = [1, 6, 3], strides = [1, 1, 1]} : vector<9x6x3xf32> to vector<1x6x3xf32>
    %23 = vector.shape_cast %22 : vector<1x6x3xf32> to vector<6x3xf32>
    %24 = vector.extract_strided_slice %7 {offsets = [0, 16], sizes = [3, 256], strides = [1, 1]} : vector<3x290xf32> to vector<3x256xf32>
    %cst_18 = arith.constant dense<0.000000e+00> : vector<6x256xf32>
    %25 = tpu.matmul %23, %24, %cst_18 {dimension_numbers = #tpu.dot_dimension_numbers<[1], [0], [0], [1], [0, 0, 1, 1], [], []>} : vector<6x3xf32>, vector<3x256xf32>, vector<6x256xf32> -> vector<6x256xf32>
    %26 = arith.addf %21, %25 : vector<6x256xf32>
    %27 = vector.extract_strided_slice %4 {offsets = [4, 0, 0], sizes = [1, 6, 3], strides = [1, 1, 1]} : vector<9x6x3xf32> to vector<1x6x3xf32>
    %28 = vector.shape_cast %27 : vector<1x6x3xf32> to vector<6x3xf32>
    %29 = vector.extract_strided_slice %7 {offsets = [0, 17], sizes = [3, 256], strides = [1, 1]} : vector<3x290xf32> to vector<3x256xf32>
    %cst_19 = arith.constant dense<0.000000e+00> : vector<6x256xf32>
    %30 = tpu.matmul %28, %29, %cst_19 {dimension_numbers = #tpu.dot_dimension_numbers<[1], [0], [0], [1], [0, 0, 1, 1], [], []>} : vector<6x3xf32>, vector<3x256xf32>, vector<6x256xf32> -> vector<6x256xf32>
    %31 = arith.addf %26, %30 : vector<6x256xf32>
    %32 = vector.extract_strided_slice %4 {offsets = [5, 0, 0], sizes = [1, 6, 3], strides = [1, 1, 1]} : vector<9x6x3xf32> to vector<1x6x3xf32>
    %33 = vector.shape_cast %32 : vector<1x6x3xf32> to vector<6x3xf32>
    %34 = vector.extract_strided_slice %7 {offsets = [0, 18], sizes = [3, 256], strides = [1, 1]} : vector<3x290xf32> to vector<3x256xf32>
    %cst_20 = arith.constant dense<0.000000e+00> : vector<6x256xf32>
    %35 = tpu.matmul %33, %34, %cst_20 {dimension_numbers = #tpu.dot_dimension_numbers<[1], [0], [0], [1], [0, 0, 1, 1], [], []>} : vector<6x3xf32>, vector<3x256xf32>, vector<6x256xf32> -> vector<6x256xf32>
    %36 = arith.addf %31, %35 : vector<6x256xf32>
    %37 = vector.extract_strided_slice %4 {offsets = [6, 0, 0], sizes = [1, 6, 3], strides = [1, 1, 1]} : vector<9x6x3xf32> to vector<1x6x3xf32>
    %38 = vector.shape_cast %37 : vector<1x6x3xf32> to vector<6x3xf32>
    %39 = vector.extract_strided_slice %7 {offsets = [0, 32], sizes = [3, 256], strides = [1, 1]} : vector<3x290xf32> to vector<3x256xf32>
    %cst_21 = arith.constant dense<0.000000e+00> : vector<6x256xf32>
    %40 = tpu.matmul %38, %39, %cst_21 {dimension_numbers = #tpu.dot_dimension_numbers<[1], [0], [0], [1], [0, 0, 1, 1], [], []>} : vector<6x3xf32>, vector<3x256xf32>, vector<6x256xf32> -> vector<6x256xf32>
    %41 = arith.addf %36, %40 : vector<6x256xf32>
    %42 = vector.extract_strided_slice %4 {offsets = [7, 0, 0], sizes = [1, 6, 3], strides = [1, 1, 1]} : vector<9x6x3xf32> to vector<1x6x3xf32>
    %43 = vector.shape_cast %42 : vector<1x6x3xf32> to vector<6x3xf32>
    %44 = vector.extract_strided_slice %7 {offsets = [0, 33], sizes = [3, 256], strides = [1, 1]} : vector<3x290xf32> to vector<3x256xf32>
    %cst_22 = arith.constant dense<0.000000e+00> : vector<6x256xf32>
    %45 = tpu.matmul %43, %44, %cst_22 {dimension_numbers = #tpu.dot_dimension_numbers<[1], [0], [0], [1], [0, 0, 1, 1], [], []>} : vector<6x3xf32>, vector<3x256xf32>, vector<6x256xf32> -> vector<6x256xf32>
    %46 = arith.addf %41, %45 : vector<6x256xf32>
    %47 = vector.extract_strided_slice %4 {offsets = [8, 0, 0], sizes = [1, 6, 3], strides = [1, 1, 1]} : vector<9x6x3xf32> to vector<1x6x3xf32>
    %48 = vector.shape_cast %47 : vector<1x6x3xf32> to vector<6x3xf32>
    %49 = vector.extract_strided_slice %7 {offsets = [0, 34], sizes = [3, 256], strides = [1, 1]} : vector<3x290xf32> to vector<3x256xf32>
    %cst_23 = arith.constant dense<0.000000e+00> : vector<6x256xf32>
    %50 = tpu.matmul %48, %49, %cst_23 {dimension_numbers = #tpu.dot_dimension_numbers<[1], [0], [0], [1], [0, 0, 1, 1], [], []>} : vector<6x3xf32>, vector<3x256xf32>, vector<6x256xf32> -> vector<6x256xf32>
    %51 = arith.addf %46, %50 : vector<6x256xf32>
    %52 = vector.broadcast %5 : vector<6x1xf32> to vector<6x256xf32>
    %53 = arith.addf %51, %52 : vector<6x256xf32>
    %c0_24 = arith.constant 0 : index
    %c0_25 = arith.constant 0 : index
    %c0_26 = arith.constant 0 : index
    %54 = vector.load %arg4[%c0_24, %c0_25, %c0_26] : memref<1x6x256xf32, #tpu.memory_space<vmem>>, vector<1x6x256xf32>
    %55 = vector.shape_cast %54 : vector<1x6x256xf32> to vector<6x256xf32>
    %56 = vector.shape_cast %53 : vector<6x256xf32> to vector<1x6x256xf32>
    tpu.vector_store %arg4[%c0_24, %c0_25, %c0_26], %56 {strides = array<i32>} : memref<1x6x256xf32, #tpu.memory_space<vmem>>, vector<1x6x256xf32>,
    return
  }
  func.func @transform_0(%arg0: i32) -> (i32, i32, i32) {
    %c0_i32 = arith.constant 0 : i32
    %c0_i32_0 = arith.constant 0 : i32
    %c0_i32_1 = arith.constant 0 : i32
    return %arg0, %c0_i32, %c0_i32_0 : i32, i32, i32
  }
  func.func @transform_1(%arg0: i32) -> (i32, i32, i32) {
    %c0_i32 = arith.constant 0 : i32
    %c0_i32_0 = arith.constant 0 : i32
    %c0_i32_1 = arith.constant 0 : i32
    %c0_i32_2 = arith.constant 0 : i32
    return %c0_i32, %c0_i32_0, %c0_i32_1 : i32, i32, i32
  }
  func.func @transform_2(%arg0: i32) -> (i32, i32) {
    %c0_i32 = arith.constant 0 : i32
    %c0_i32_0 = arith.constant 0 : i32
    %c0_i32_1 = arith.constant 0 : i32
    return %c0_i32, %c0_i32_0 : i32, i32
  }
  func.func @transform_3(%arg0: i32) -> (i32, i32, i32) {
    %c0_i32 = arith.constant 0 : i32
    %c0_i32_0 = arith.constant 0 : i32
    %c0_i32_1 = arith.constant 0 : i32
    return %arg0, %c0_i32, %c0_i32_0 : i32, i32, i32
  }
}

</mosaic_0001>

<llo_original>
// kernel: tpu_custom_call.1
$region0: #{tpu_custom_call.1}
  #allocation0 [shape = 'u32[]', space=smem, size = 0x4, offset = 0x4, fixed_abs, tag = 'smem constant byte address 0x4 - core index']
  #allocation1 [shape = 'u32[72,128]{1,0:T(1,128)}', space=vmem, size = 0x9000, scoped, tag = 'internal scratch']
  #allocation2 [shape = 'f32[1,3,290]{2,1,0:T(4,128)}', space=vmem, size = 0x1800, scoped, tag = 'scratch operand']
  %s0 = inlined_call_operand.vmem [shape: f32[2,3,256], index: 0, kind: input, shape index: {}]
  %s1 = inlined_call_operand.vmem [shape: f32[9,6,3], index: 1, kind: input, shape index: {}]
  %s2 = inlined_call_operand.vmem [shape: f32[6,1], index: 2, kind: input, shape index: {}]
  %s3 = inlined_call_operand.vmem [shape: f32[2,6,256], index: 3, kind: output, shape index: {}]
  %s4 = sld [smem:[#allocation0]]
  $region45: #{tpu_custom_call.1} parent=0
    _
  %s6 = ssub.s32 1, %s4
  %s7 = scalar_select 0, %s6, %s4
  loop: start=0, step=1, limit=4
  $region2: #{tpu_custom_call.1} parent=0 // loop_pre_header
    _
  $region3: #{tpu_custom_call.1} parent=0 // loop_header
    %s9 = sphi 0, %s13
    %p10 = scmp.ge.s32.totalorder %s9, 4
    %s19 = sphi 0, %s21
    %s22 = sphi 0, %s19
    %s23 = sphi 0, %s22
    %s39 = sphi 0, %s23
    %s43 = sphi 0, %s43
    %s45 = sphi 0, %s43
    %s46 = sphi 0, %s45
    %s60 = sphi 0, %s46
    %s64 = sphi 0, %s64
    %s66 = sphi 0, %s64
    %s67 = sphi 0, %s66
    %s81 = sphi 0, %s67
    %s87 = sphi 0, %s89
    %s90 = sphi 0, %s87
    %s91 = sphi 0, %s90
    %s107 = sphi 0, %s91
  $region4: #{tpu_custom_call.1} parent=0 // loop_header_branch
    %12 = sbr.rel (%p10) target = $region8
  $region5: #{tpu_custom_call.1} parent=0 // loop_body
    %s14 = ssub.s32 %s9, 1
    %s15 = ssub.s32 %s9, 2
    %s16 = sadd.s32 %s9, 1
    %s17 = ssub.s32 %s9, %s16
    %p18 = scmp.eq.s32.totalorder %s17, 0
    %s20 = sadd.s32 %s19, 1
    %s21 = scalar_select %p18, %s19, %s20
    %p24 = pneg %p18
    %p25 = scmp.eq.s32.totalorder %s9, 1
    %p26 = por %p24, %p25
    %p27 = scmp.ne.s32.totalorder %s19, %s22
    %p28 = scmp.eq.s32.totalorder %s9, 0
    %p29 = por %p27, %p28
    %p30 = scmp.ne.s32.totalorder %s19, %s22
    %p31 = scmp.eq.s32.totalorder %s14, 1
    %p32 = por %p30, %p31
    %p33 = scmp.ne.s32.totalorder %s22, %s23
    %p34 = scmp.eq.s32.totalorder %s14, 0
    %p35 = por %p33, %p34
    %p36 = scmp.ne.s32.totalorder %s22, %s23
    %p37 = scmp.eq.s32.totalorder %s15, 1
    %p38 = por %p36, %p37
    %p40 = scmp.ne.s32.totalorder %s23, %s39
    %p41 = scmp.eq.s32.totalorder %s15, 0
    %p42 = por %p40, %p41
    %s44 = sadd.s32 %s43, 1
    %p47 = scmp.eq.s32.totalorder %s9, 1
    %p48 = scmp.ne.s32.totalorder %s43, %s45
    %p49 = scmp.eq.s32.totalorder %s9, 0
    %p50 = por %p48, %p49
    %p51 = scmp.ne.s32.totalorder %s43, %s45
    %p52 = scmp.eq.s32.totalorder %s14, 1
    %p53 = por %p51, %p52
    %p54 = scmp.ne.s32.totalorder %s45, %s46
    %p55 = scmp.eq.s32.totalorder %s14, 0
    %p56 = por %p54, %p55
    %p57 = scmp.ne.s32.totalorder %s45, %s46
    %p58 = scmp.eq.s32.totalorder %s15, 1
    %p59 = por %p57, %p58
    %p61 = scmp.ne.s32.totalorder %s46, %s60
    %p62 = scmp.eq.s32.totalorder %s15, 0
    %p63 = por %p61, %p62
    %s65 = sadd.s32 %s64, 1
    %p68 = scmp.eq.s32.totalorder %s9, 1
    %p69 = scmp.ne.s32.totalorder %s64, %s66
    %p70 = scmp.eq.s32.totalorder %s9, 0
    %p71 = por %p69, %p70
    %p72 = scmp.ne.s32.totalorder %s64, %s66
    %p73 = scmp.eq.s32.totalorder %s14, 1
    %p74 = por %p72, %p73
    %p75 = scmp.ne.s32.totalorder %s66, %s67
    %p76 = scmp.eq.s32.totalorder %s14, 0
    %p77 = por %p75, %p76
    %p78 = scmp.ne.s32.totalorder %s66, %s67
    %p79 = scmp.eq.s32.totalorder %s15, 1
    %p80 = por %p78, %p79
    %p82 = scmp.ne.s32.totalorder %s67, %s81
    %p83 = scmp.eq.s32.totalorder %s15, 0
    %p84 = por %p82, %p83
    %s85 = ssub.s32 %s9, %s16
    %p86 = scmp.eq.s32.totalorder %s85, 0
    %s88 = sadd.s32 %s87, 1
    %s89 = scalar_select %p86, %s87, %s88
    %p92 = pneg %p86
    %p93 = scmp.eq.s32.totalorder %s9, 1
    %p94 = por %p92, %p93
    %p95 = scmp.ne.s32.totalorder %s87, %s90
    %p96 = scmp.eq.s32.totalorder %s9, 0
    %p97 = por %p95, %p96
    %p98 = scmp.ne.s32.totalorder %s87, %s90
    %p99 = scmp.eq.s32.totalorder %s14, 1
    %p100 = por %p98, %p99
    %p101 = scmp.ne.s32.totalorder %s90, %s91
    %p102 = scmp.eq.s32.totalorder %s14, 0
    %p103 = por %p101, %p102
    %p104 = scmp.ne.s32.totalorder %s90, %s91
    %p105 = scmp.eq.s32.totalorder %s15, 1
    %p106 = por %p104, %p105
    %p108 = scmp.ne.s32.totalorder %s91, %s107
    %p109 = scmp.eq.s32.totalorder %s15, 0
    %p110 = por %p108, %p109
    %p111 = scmp.le.s32.totalorder 1, %s9
    %p112 = scmp.lt.s32.totalorder %s9, 3
    %p113 = pnand %p111, %p112
    %p114 = pneg %p113
    // Predicated region
    $region9: #{tpu_custom_call.1} parent=5 // pred_check
      _
    $region10: #{tpu_custom_call.1} parent=5 // pred_check_branch
      %116 = sbr.rel (%p113) target = $region12
    $region11: #{tpu_custom_call.1} parent=5 // pred_region
      %s117 = ssub.s32 %s9, 1
      // Predicated region
      $region13: #{tpu_custom_call.1} parent=11 // pred_check
        %p118 = pneg %p56
      $region14: #{tpu_custom_call.1} parent=11 // pred_check_branch
        %120 = sbr.rel (%p118) target = $region16
      $region15: #{tpu_custom_call.1} parent=11 // pred_region
        _
      $region16: #{tpu_custom_call.1} parent=11 // pred_fallthru
        _
      // Predicated region
      $region17: #{tpu_custom_call.1} parent=11 // pred_check
        %p121 = pneg %p77
      $region18: #{tpu_custom_call.1} parent=11 // pred_check_branch
        %123 = sbr.rel (%p121) target = $region20
      $region19: #{tpu_custom_call.1} parent=11 // pred_region
        _
      $region20: #{tpu_custom_call.1} parent=11 // pred_fallthru
        _
    $region12: #{tpu_custom_call.1} parent=5 // pred_fallthru
      _
    %p124 = scmp.lt.s32.totalorder %s9, 2
    // Predicated region
    $region21: #{tpu_custom_call.1} parent=5 // pred_check
      %p125 = pneg %p124
    $region22: #{tpu_custom_call.1} parent=5 // pred_check_branch
      %127 = sbr.rel (%p125) target = $region24
    $region23: #{tpu_custom_call.1} parent=5 // pred_region
      // Predicated region
      $region25: #{tpu_custom_call.1} parent=23 // pred_check
        %p128 = pneg %p29
      $region26: #{tpu_custom_call.1} parent=23 // pred_check_branch
        %130 = sbr.rel (%p128) target = $region28
      $region27: #{tpu_custom_call.1} parent=23 // pred_region
        %p131 = scmp.lt.s32.totalorder %s9, 1
        %s132 = scalar_select %p131, %s9, 1
        %s133 = smul.addr %s132, 2
        %s134 = smul.addr %s133, 4
        %s135 = scalar_lea.vmem %s0, %s134
      $region28: #{tpu_custom_call.1} parent=23 // pred_fallthru
        _
    $region24: #{tpu_custom_call.1} parent=5 // pred_fallthru
      _
    %p136 = scmp.le.s32.totalorder 1, %s9
    %p137 = scmp.lt.s32.totalorder %s9, 3
    %p138 = pnand %p136, %p137
    %p139 = pneg %p138
    // Predicated region
    $region29: #{tpu_custom_call.1} parent=5 // pred_check
      _
    $region30: #{tpu_custom_call.1} parent=5 // pred_check_branch
      %141 = sbr.rel (%p138) target = $region32
    $region31: #{tpu_custom_call.1} parent=5 // pred_region
      %s142 = ssub.s32 %s9, 1
      %p143 = scmp.lt.s32.totalorder %s14, 1
      %s144 = scalar_select %p143, %s14, 1
      %s145 = smul.addr %s144, 2
      %s146 = smul.addr %s145, 4
      %s147 = scalar_lea.vmem %s0, %s146
      %p148 = pneg %p35
      %p149 = pneg %p32
      %p150 = pneg %p56
      %p151 = pneg %p53
      %p152 = pneg %p77
      %p153 = pneg %p74
      %p154 = pneg %p103
      %p155 = pneg %p100
      %p156 = scmp.lt.s32.totalorder %s14, 1
      %s157 = scalar_select %p156, %s14, 1
      %s158 = smul.addr %s157, 2
      %s159 = smul.addr %s158, 8
      %s160 = scalar_lea.vmem %s3, %s159
      %p161 = scmp.lt.s32.totalorder %s14, 1
      %s162 = scalar_select %p161, %s14, 1
      %s163 = smul.addr %s162, 2
      %s164 = smul.addr %s163, 4
      %s165 = scalar_lea.vmem %s0, %s164
      %p166 = scmp.lt.s32.totalorder %s14, 1
      %s167 = scalar_select %p166, %s14, 1
      %s168 = smul.addr %s167, 2
      %s169 = smul.addr %s168, 8
      %s170 = scalar_lea.vmem %s3, %s169
      %vm171 = vcmask 272384
      %172 = vst.msk [vmem:[#allocation2 + $0x8] sm:$0x7] %vm171, 0.0
      %v173 = vld [vmem:[%s165] sm:$0x77]
      %174 = vst [vmem:[#allocation2] sm:$0x77] %v173
      %v175 = vld [vmem:[%s1] sm:$0x3f]
      %v176 = vld [vmem:[%s1 + $0x8] sm:$0x3f]
      %v177 = vld [vmem:[%s1 + $0x10] sm:$0x3f]
      %v178 = vld [vmem:[%s1 + $0x18] sm:$0x3f]
      %v179 = vld [vmem:[%s1 + $0x20] sm:$0x3f]
      %v180 = vld [vmem:[%s1 + $0x28] sm:$0x3f]
      %v181 = vld [vmem:[%s1 + $0x30] sm:$0x3f]
      %v182 = vld [vmem:[%s1 + $0x38] sm:$0x3f]
      %v183 = vld [vmem:[%s1 + $0x40] sm:$0x3f]
      %v184 = vld [vmem:[%s2] sm:$0x3f]
      %v185 = vld [vmem:[#allocation2] sm:$0x77]
      %v186 = vld [vmem:[#allocation2 + $0x8] sm:$0x7]
      %189 = vst [vmem:[#allocation1] ss:$2 sm:$0xff] %v185
      %s190 = scalar_lea.vmem [#allocation1], 16
      %191 = vst [vmem:[%s190] ss:$2 sm:$0xff] %v186
      %v192 = vld.sshfl [vmem:[#allocation1] sm:$0xff pattern:$0x75316420]
      %v193 = vld.sshfl [vmem:[#allocation1 + $0x8] sm:$0xff pattern:$0x75316420]
      %v194 = vld.sshfl [vmem:[#allocation1 + $0x10] sm:$0xff pattern:$0x75316420]
      %195 = vrot.lane.b32.xlu0 %v192, 127
      %v196 = vpop.permute.xlu0 %195
      %197 = vrot.lane.b32.xlu0 %v193, 127
      %v198 = vpop.permute.xlu0 %197
      %199 = vrot.lane.b32.xlu0 %v194, 127
      %v200 = vpop.permute.xlu0 %199
      %vm201 = vcmask 1039360
      %v202 = vsel %vm201, %v196, %v198
      %v203 = vsel %vm201, %v198, %v200
      %vm204 = vcmask 23552
      %v206 = vsel %vm204, %v176, 0
      %vm208 = vcmask 1042432
      %v209 = vsel %vm208, %v202, 0
      %v211 = vsel %vm208, %v203, 0
      %213 = vmatpush.msra.mxu0 0.0
      %214 = vmatpush.msra.mxu0 0.0
      %215 = vmatpush.msra.mxu0 0.0
      %216 = vmatpush.msra.mxu0 0.0
      %217 = vmatpush.msra.mxu0 0.0
      %218 = vmatpush.msra.mxu0 0.0
      %219 = vmatpush.msra.mxu0 0.0
      %220 = vmatpush.msra.mxu0 0.0
      %221 = vmatpush.msra.mxu0 0.0
      %222 = vmatpush.msra.mxu0 0.0
      %223 = vmatpush.msra.mxu0 0.0
      %224 = vmatpush.msra.mxu0 0.0
      %225 = vmatpush.msra.mxu0 0.0
      %226 = vmatpush.msra.mxu0 0.0
      %227 = vmatpush.msra.mxu0 0.0
      %228 = vmatpush.msra.mxu0 %v209
      %229 = vmatmul.f32.gmra.mxu0 %v206
      %v230 = vpop.f32.mrf.mxu0
      %v231 = vadd.f32 0.0, %v230
      %232 = vdwg.mxu0
      %233 = vmatpush.msra.mxu0 0.0
      %234 = vmatpush.msra.mxu0 0.0
      %235 = vmatpush.msra.mxu0 0.0
      %236 = vmatpush.msra.mxu0 0.0
      %237 = vmatpush.msra.mxu0 0.0
      %238 = vmatpush.msra.mxu0 0.0
      %239 = vmatpush.msra.mxu0 0.0
      %240 = vmatpush.msra.mxu0 0.0
      %241 = vmatpush.msra.mxu0 0.0
      %242 = vmatpush.msra.mxu0 0.0
      %243 = vmatpush.msra.mxu0 0.0
      %244 = vmatpush.msra.mxu0 0.0
      %245 = vmatpush.msra.mxu0 0.0
      %246 = vmatpush.msra.mxu0 0.0
      %247 = vmatpush.msra.mxu0 0.0
      %248 = vmatpush.msra.mxu0 %v211
      %249 = vmatmul.f32.gmra.mxu0 %v206
      %v250 = vpop.f32.mrf.mxu0
      %v251 = vadd.f32 0.0, %v250
      %252 = vdwg.mxu0
      %253 = vst [vmem:[#allocation1] ss:$2 sm:$0xff] %v185
      %v254 = vld.sshfl [vmem:[#allocation1] sm:$0xff pattern:$0x75316420]
      %v255 = vld.sshfl [vmem:[#allocation1 + $0x8] sm:$0xff pattern:$0x75316420]
      %v257 = vsel %vm204, %v175, 0
      %v259 = vsel %vm208, %v254, 0
      %v261 = vsel %vm208, %v255, 0
      %263 = vmatpush.msra.mxu0 0.0
      %264 = vmatpush.msra.mxu0 0.0
      %265 = vmatpush.msra.mxu0 0.0
      %266 = vmatpush.msra.mxu0 0.0
      %267 = vmatpush.msra.mxu0 0.0
      %268 = vmatpush.msra.mxu0 0.0
      %269 = vmatpush.msra.mxu0 0.0
      %270 = vmatpush.msra.mxu0 0.0
      %271 = vmatpush.msra.mxu0 0.0
      %272 = vmatpush.msra.mxu0 0.0
      %273 = vmatpush.msra.mxu0 0.0
      %274 = vmatpush.msra.mxu0 0.0
      %275 = vmatpush.msra.mxu0 0.0
      %276 = vmatpush.msra.mxu0 0.0
      %277 = vmatpush.msra.mxu0 0.0
      %278 = vmatpush.msra.mxu0 %v259
      %279 = vmatmul.f32.gmra.mxu0 %v257
      %v280 = vpop.f32.mrf.mxu0
      %v281 = vadd.f32 %v231, %v280
      %282 = vdwg.mxu0
      %283 = vmatpush.msra.mxu0 0.0
      %284 = vmatpush.msra.mxu0 0.0
      %285 = vmatpush.msra.mxu0 0.0
      %286 = vmatpush.msra.mxu0 0.0
      %287 = vmatpush.msra.mxu0 0.0
      %288 = vmatpush.msra.mxu0 0.0
      %289 = vmatpush.msra.mxu0 0.0
      %290 = vmatpush.msra.mxu0 0.0
      %291 = vmatpush.msra.mxu0 0.0
      %292 = vmatpush.msra.mxu0 0.0
      %293 = vmatpush.msra.mxu0 0.0
      %294 = vmatpush.msra.mxu0 0.0
      %295 = vmatpush.msra.mxu0 0.0
      %296 = vmatpush.msra.mxu0 0.0
      %297 = vmatpush.msra.mxu0 0.0
      %298 = vmatpush.msra.mxu0 %v261
      %299 = vmatmul.f32.gmra.mxu0 %v257
      %v300 = vpop.f32.mrf.mxu0
      %v301 = vadd.f32 %v251, %v300
      %302 = vdwg.mxu0
      %303 = vst [vmem:[#allocation1] ss:$2 sm:$0xff] %v185
      %s304 = scalar_lea.vmem [#allocation1], 16
      %305 = vst [vmem:[%s304] ss:$2 sm:$0xff] %v186
      %v306 = vld.sshfl [vmem:[#allocation1] sm:$0xff pattern:$0x75316420]
      %v307 = vld.sshfl [vmem:[#allocation1 + $0x8] sm:$0xff pattern:$0x75316420]
      %v308 = vld.sshfl [vmem:[#allocation1 + $0x10] sm:$0xff pattern:$0x75316420]
      %309 = vrot.lane.b32.xlu0 %v306, 126
      %v310 = vpop.permute.xlu0 %309
      %311 = vrot.lane.b32.xlu0 %v307, 126
      %v312 = vpop.permute.xlu0 %311
      %313 = vrot.lane.b32.xlu0 %v308, 126
      %v314 = vpop.permute.xlu0 %313
      %vm315 = vcmask 1031168
      %v316 = vsel %vm315, %v310, %v312
      %v317 = vsel %vm315, %v312, %v314
      %v319 = vsel %vm204, %v177, 0
      %v321 = vsel %vm208, %v316, 0
      %v323 = vsel %vm208, %v317, 0
      %325 = vmatpush.msra.mxu0 0.0
      %326 = vmatpush.msra.mxu0 0.0
      %327 = vmatpush.msra.mxu0 0.0
      %328 = vmatpush.msra.mxu0 0.0
      %329 = vmatpush.msra.mxu0 0.0
      %330 = vmatpush.msra.mxu0 0.0
      %331 = vmatpush.msra.mxu0 0.0
      %332 = vmatpush.msra.mxu0 0.0
      %333 = vmatpush.msra.mxu0 0.0
      %334 = vmatpush.msra.mxu0 0.0
      %335 = vmatpush.msra.mxu0 0.0
      %336 = vmatpush.msra.mxu0 0.0
      %337 = vmatpush.msra.mxu0 0.0
      %338 = vmatpush.msra.mxu0 0.0
      %339 = vmatpush.msra.mxu0 0.0
      %340 = vmatpush.msra.mxu0 %v321
      %341 = vmatmul.f32.gmra.mxu0 %v319
      %v342 = vpop.f32.mrf.mxu0
      %v343 = vadd.f32 0.0, %v342
      %344 = vdwg.mxu0
      %345 = vmatpush.msra.mxu0 0.0
      %346 = vmatpush.msra.mxu0 0.0
      %347 = vmatpush.msra.mxu0 0.0
      %348 = vmatpush.msra.mxu0 0.0
      %349 = vmatpush.msra.mxu0 0.0
      %350 = vmatpush.msra.mxu0 0.0
      %351 = vmatpush.msra.mxu0 0.0
      %352 = vmatpush.msra.mxu0 0.0
      %353 = vmatpush.msra.mxu0 0.0
      %354 = vmatpush.msra.mxu0 0.0
      %355 = vmatpush.msra.mxu0 0.0
      %356 = vmatpush.msra.mxu0 0.0
      %357 = vmatpush.msra.mxu0 0.0
      %358 = vmatpush.msra.mxu0 0.0
      %359 = vmatpush.msra.mxu0 0.0
      %360 = vmatpush.msra.mxu0 %v323
      %361 = vmatmul.f32.gmra.mxu0 %v319
      %v362 = vpop.f32.mrf.mxu0
      %v363 = vadd.f32 0.0, %v362
      %364 = vdwg.mxu0
      %v365 = vadd.f32 %v281, %v343
      %v366 = vadd.f32 %v301, %v363
      %367 = vst [vmem:[#allocation1] ss:$2 sm:$0xff] %v185
      %s368 = scalar_lea.vmem [#allocation1], 16
      %369 = vst [vmem:[%s368] ss:$2 sm:$0xff] %v186
      %v370 = vld.sshfl [vmem:[#allocation1] sm:$0xff pattern:$0x75316420]
      %v371 = vld.sshfl [vmem:[#allocation1 + $0x8] sm:$0xff pattern:$0x75316420]
      %v372 = vld.sshfl [vmem:[#allocation1 + $0x10] sm:$0xff pattern:$0x75316420]
      %373 = vrot.lane.b32.xlu0 %v370, 112
      %v374 = vpop.permute.xlu0 %373
      %375 = vrot.lane.b32.xlu0 %v371, 112
      %v376 = vpop.permute.xlu0 %375
      %377 = vrot.lane.b32.xlu0 %v372, 112
      %v378 = vpop.permute.xlu0 %377
      %vm379 = vcmask 916480
      %v380 = vsel %vm379, %v374, %v376
      %v381 = vsel %vm379, %v376, %v378
      %v383 = vsel %vm204, %v178, 0
      %v385 = vsel %vm208, %v380, 0
      %v387 = vsel %vm208, %v381, 0
      %389 = vmatpush.msra.mxu0 0.0
      %390 = vmatpush.msra.mxu0 0.0
      %391 = vmatpush.msra.mxu0 0.0
      %392 = vmatpush.msra.mxu0 0.0
      %393 = vmatpush.msra.mxu0 0.0
      %394 = vmatpush.msra.mxu0 0.0
      %395 = vmatpush.msra.mxu0 0.0
      %396 = vmatpush.msra.mxu0 0.0
      %397 = vmatpush.msra.mxu0 0.0
      %398 = vmatpush.msra.mxu0 0.0
      %399 = vmatpush.msra.mxu0 0.0
      %400 = vmatpush.msra.mxu0 0.0
      %401 = vmatpush.msra.mxu0 0.0
      %402 = vmatpush.msra.mxu0 0.0
      %403 = vmatpush.msra.mxu0 0.0
      %404 = vmatpush.msra.mxu0 %v385
      %405 = vmatmul.f32.gmra.mxu0 %v383
      %v406 = vpop.f32.mrf.mxu0
      %v407 = vadd.f32 0.0, %v406
      %408 = vdwg.mxu0
      %409 = vmatpush.msra.mxu0 0.0
      %410 = vmatpush.msra.mxu0 0.0
      %411 = vmatpush.msra.mxu0 0.0
      %412 = vmatpush.msra.mxu0 0.0
      %413 = vmatpush.msra.mxu0 0.0
      %414 = vmatpush.msra.mxu0 0.0
      %415 = vmatpush.msra.mxu0 0.0
      %416 = vmatpush.msra.mxu0 0.0
      %417 = vmatpush.msra.mxu0 0.0
      %418 = vmatpush.msra.mxu0 0.0
      %419 = vmatpush.msra.mxu0 0.0
      %420 = vmatpush.msra.mxu0 0.0
      %421 = vmatpush.msra.mxu0 0.0
      %422 = vmatpush.msra.mxu0 0.0
      %423 = vmatpush.msra.mxu0 0.0
      %424 = vmatpush.msra.mxu0 %v387
      %425 = vmatmul.f32.gmra.mxu0 %v383
      %v426 = vpop.f32.mrf.mxu0
      %v427 = vadd.f32 0.0, %v426
      %428 = vdwg.mxu0
      %v429 = vadd.f32 %v365, %v407
      %v430 = vadd.f32 %v366, %v427
      %431 = vst [vmem:[#allocation1] ss:$2 sm:$0xff] %v185
      %s432 = scalar_lea.vmem [#allocation1], 16
      %433 = vst [vmem:[%s432] ss:$2 sm:$0xff] %v186
      %v434 = vld.sshfl [vmem:[#allocation1] sm:$0xff pattern:$0x75316420]
      %v435 = vld.sshfl [vmem:[#allocation1 + $0x8] sm:$0xff pattern:$0x75316420]
      %v436 = vld.sshfl [vmem:[#allocation1 + $0x10] sm:$0xff pattern:$0x75316420]
      %437 = vrot.lane.b32.xlu0 %v434, 111
      %v438 = vpop.permute.xlu0 %437
      %439 = vrot.lane.b32.xlu0 %v435, 111
      %v440 = vpop.permute.xlu0 %439
      %441 = vrot.lane.b32.xlu0 %v436, 111
      %v442 = vpop.permute.xlu0 %441
      %vm443 = vcmask 908288
      %v444 = vsel %vm443, %v438, %v440
      %v445 = vsel %vm443, %v440, %v442
      %v447 = vsel %vm204, %v179, 0
      %v449 = vsel %vm208, %v444, 0
      %v451 = vsel %vm208, %v445, 0
      %453 = vmatpush.msra.mxu0 0.0
      %454 = vmatpush.msra.mxu0 0.0
      %455 = vmatpush.msra.mxu0 0.0
      %456 = vmatpush.msra.mxu0 0.0
      %457 = vmatpush.msra.mxu0 0.0
      %458 = vmatpush.msra.mxu0 0.0
      %459 = vmatpush.msra.mxu0 0.0
      %460 = vmatpush.msra.mxu0 0.0
      %461 = vmatpush.msra.mxu0 0.0
      %462 = vmatpush.msra.mxu0 0.0
      %463 = vmatpush.msra.mxu0 0.0
      %464 = vmatpush.msra.mxu0 0.0
      %465 = vmatpush.msra.mxu0 0.0
      %466 = vmatpush.msra.mxu0 0.0
      %467 = vmatpush.msra.mxu0 0.0
      %468 = vmatpush.msra.mxu0 %v449
      %469 = vmatmul.f32.gmra.mxu0 %v447
      %v470 = vpop.f32.mrf.mxu0
      %v471 = vadd.f32 0.0, %v470
      %472 = vdwg.mxu0
      %473 = vmatpush.msra.mxu0 0.0
      %474 = vmatpush.msra.mxu0 0.0
      %475 = vmatpush.msra.mxu0 0.0
      %476 = vmatpush.msra.mxu0 0.0
      %477 = vmatpush.msra.mxu0 0.0
      %478 = vmatpush.msra.mxu0 0.0
      %479 = vmatpush.msra.mxu0 0.0
      %480 = vmatpush.msra.mxu0 0.0
      %481 = vmatpush.msra.mxu0 0.0
      %482 = vmatpush.msra.mxu0 0.0
      %483 = vmatpush.msra.mxu0 0.0
      %484 = vmatpush.msra.mxu0 0.0
      %485 = vmatpush.msra.mxu0 0.0
      %486 = vmatpush.msra.mxu0 0.0
      %487 = vmatpush.msra.mxu0 0.0
      %488 = vmatpush.msra.mxu0 %v451
      %489 = vmatmul.f32.gmra.mxu0 %v447
      %v490 = vpop.f32.mrf.mxu0
      %v491 = vadd.f32 0.0, %v490
      %492 = vdwg.mxu0
      %v493 = vadd.f32 %v429, %v471
      %v494 = vadd.f32 %v430, %v491
      %495 = vst [vmem:[#allocation1] ss:$2 sm:$0xff] %v185
      %s496 = scalar_lea.vmem [#allocation1], 16
      %497 = vst [vmem:[%s496] ss:$2 sm:$0xff] %v186
      %v498 = vld.sshfl [vmem:[#allocation1] sm:$0xff pattern:$0x75316420]
      %v499 = vld.sshfl [vmem:[#allocation1 + $0x8] sm:$0xff pattern:$0x75316420]
      %v500 = vld.sshfl [vmem:[#allocation1 + $0x10] sm:$0xff pattern:$0x75316420]
      %501 = vrot.lane.b32.xlu0 %v498, 110
      %v502 = vpop.permute.xlu0 %501
      %503 = vrot.lane.b32.xlu0 %v499, 110
      %v504 = vpop.permute.xlu0 %503
      %505 = vrot.lane.b32.xlu0 %v500, 110
      %v506 = vpop.permute.xlu0 %505
      %vm507 = vcmask 900096
      %v508 = vsel %vm507, %v502, %v504
      %v509 = vsel %vm507, %v504, %v506
      %v511 = vsel %vm204, %v180, 0
      %v513 = vsel %vm208, %v508, 0
      %v515 = vsel %vm208, %v509, 0
      %517 = vmatpush.msra.mxu0 0.0
      %518 = vmatpush.msra.mxu0 0.0
      %519 = vmatpush.msra.mxu0 0.0
      %520 = vmatpush.msra.mxu0 0.0
      %521 = vmatpush.msra.mxu0 0.0
      %522 = vmatpush.msra.mxu0 0.0
      %523 = vmatpush.msra.mxu0 0.0
      %524 = vmatpush.msra.mxu0 0.0
      %525 = vmatpush.msra.mxu0 0.0
      %526 = vmatpush.msra.mxu0 0.0
      %527 = vmatpush.msra.mxu0 0.0
      %528 = vmatpush.msra.mxu0 0.0
      %529 = vmatpush.msra.mxu0 0.0
      %530 = vmatpush.msra.mxu0 0.0
      %531 = vmatpush.msra.mxu0 0.0
      %532 = vmatpush.msra.mxu0 %v513
      %533 = vmatmul.f32.gmra.mxu0 %v511
      %v534 = vpop.f32.mrf.mxu0
      %v535 = vadd.f32 0.0, %v534
      %536 = vdwg.mxu0
      %537 = vmatpush.msra.mxu0 0.0
      %538 = vmatpush.msra.mxu0 0.0
      %539 = vmatpush.msra.mxu0 0.0
      %540 = vmatpush.msra.mxu0 0.0
      %541 = vmatpush.msra.mxu0 0.0
      %542 = vmatpush.msra.mxu0 0.0
      %543 = vmatpush.msra.mxu0 0.0
      %544 = vmatpush.msra.mxu0 0.0
      %545 = vmatpush.msra.mxu0 0.0
      %546 = vmatpush.msra.mxu0 0.0
      %547 = vmatpush.msra.mxu0 0.0
      %548 = vmatpush.msra.mxu0 0.0
      %549 = vmatpush.msra.mxu0 0.0
      %550 = vmatpush.msra.mxu0 0.0
      %551 = vmatpush.msra.mxu0 0.0
      %552 = vmatpush.msra.mxu0 %v515
      %553 = vmatmul.f32.gmra.mxu0 %v511
      %v554 = vpop.f32.mrf.mxu0
      %v555 = vadd.f32 0.0, %v554
      %556 = vdwg.mxu0
      %v557 = vadd.f32 %v493, %v535
      %v558 = vadd.f32 %v494, %v555
      %559 = vst [vmem:[#allocation1] ss:$2 sm:$0xff] %v185
      %s560 = scalar_lea.vmem [#allocation1], 16
      %561 = vst [vmem:[%s560] ss:$2 sm:$0xff] %v186
      %v562 = vld.sshfl [vmem:[#allocation1] sm:$0xff pattern:$0x75316420]
      %v563 = vld.sshfl [vmem:[#allocation1 + $0x8] sm:$0xff pattern:$0x75316420]
      %v564 = vld.sshfl [vmem:[#allocation1 + $0x10] sm:$0xff pattern:$0x75316420]
      %565 = vrot.lane.b32.xlu0 %v562, 96
      %v566 = vpop.permute.xlu0 %565
      %567 = vrot.lane.b32.xlu0 %v563, 96
      %v568 = vpop.permute.xlu0 %567
      %569 = vrot.lane.b32.xlu0 %v564, 96
      %v570 = vpop.permute.xlu0 %569
      %vm571 = vcmask 785408
      %v572 = vsel %vm571, %v566, %v568
      %v573 = vsel %vm571, %v568, %v570
      %v575 = vsel %vm204, %v181, 0
      %v577 = vsel %vm208, %v572, 0
      %v579 = vsel %vm208, %v573, 0
      %581 = vmatpush.msra.mxu0 0.0
      %582 = vmatpush.msra.mxu0 0.0
      %583 = vmatpush.msra.mxu0 0.0
      %584 = vmatpush.msra.mxu0 0.0
      %585 = vmatpush.msra.mxu0 0.0
      %586 = vmatpush.msra.mxu0 0.0
      %587 = vmatpush.msra.mxu0 0.0
      %588 = vmatpush.msra.mxu0 0.0
      %589 = vmatpush.msra.mxu0 0.0
      %590 = vmatpush.msra.mxu0 0.0
      %591 = vmatpush.msra.mxu0 0.0
      %592 = vmatpush.msra.mxu0 0.0
      %593 = vmatpush.msra.mxu0 0.0
      %594 = vmatpush.msra.mxu0 0.0
      %595 = vmatpush.msra.mxu0 0.0
      %596 = vmatpush.msra.mxu0 %v577
      %597 = vmatmul.f32.gmra.mxu0 %v575
      %v598 = vpop.f32.mrf.mxu0
      %v599 = vadd.f32 0.0, %v598
      %600 = vdwg.mxu0
      %601 = vmatpush.msra.mxu0 0.0
      %602 = vmatpush.msra.mxu0 0.0
      %603 = vmatpush.msra.mxu0 0.0
      %604 = vmatpush.msra.mxu0 0.0
      %605 = vmatpush.msra.mxu0 0.0
      %606 = vmatpush.msra.mxu0 0.0
      %607 = vmatpush.msra.mxu0 0.0
      %608 = vmatpush.msra.mxu0 0.0
      %609 = vmatpush.msra.mxu0 0.0
      %610 = vmatpush.msra.mxu0 0.0
      %611 = vmatpush.msra.mxu0 0.0
      %612 = vmatpush.msra.mxu0 0.0
      %613 = vmatpush.msra.mxu0 0.0
      %614 = vmatpush.msra.mxu0 0.0
      %615 = vmatpush.msra.mxu0 0.0
      %616 = vmatpush.msra.mxu0 %v579
      %617 = vmatmul.f32.gmra.mxu0 %v575
      %v618 = vpop.f32.mrf.mxu0
      %v619 = vadd.f32 0.0, %v618
      %620 = vdwg.mxu0
      %v621 = vadd.f32 %v557, %v599
      %v622 = vadd.f32 %v558, %v619
      %623 = vst [vmem:[#allocation1] ss:$2 sm:$0xff] %v185
      %s624 = scalar_lea.vmem [#allocation1], 16
      %625 = vst [vmem:[%s624] ss:$2 sm:$0xff] %v186
      %v626 = vld.sshfl [vmem:[#allocation1] sm:$0xff pattern:$0x75316420]
      %v627 = vld.sshfl [vmem:[#allocation1 + $0x8] sm:$0xff pattern:$0x75316420]
      %v628 = vld.sshfl [vmem:[#allocation1 + $0x10] sm:$0xff pattern:$0x75316420]
      %629 = vrot.lane.b32.xlu0 %v626, 95
      %v630 = vpop.permute.xlu0 %629
      %631 = vrot.lane.b32.xlu0 %v627, 95
      %v632 = vpop.permute.xlu0 %631
      %633 = vrot.lane.b32.xlu0 %v628, 95
      %v634 = vpop.permute.xlu0 %633
      %vm635 = vcmask 777216
      %v636 = vsel %vm635, %v630, %v632
      %v637 = vsel %vm635, %v632, %v634
      %v639 = vsel %vm204, %v182, 0
      %v641 = vsel %vm208, %v636, 0
      %v643 = vsel %vm208, %v637, 0
      %645 = vmatpush.msra.mxu0 0.0
      %646 = vmatpush.msra.mxu0 0.0
      %647 = vmatpush.msra.mxu0 0.0
      %648 = vmatpush.msra.mxu0 0.0
      %649 = vmatpush.msra.mxu0 0.0
      %650 = vmatpush.msra.mxu0 0.0
      %651 = vmatpush.msra.mxu0 0.0
      %652 = vmatpush.msra.mxu0 0.0
      %653 = vmatpush.msra.mxu0 0.0
      %654 = vmatpush.msra.mxu0 0.0
      %655 = vmatpush.msra.mxu0 0.0
      %656 = vmatpush.msra.mxu0 0.0
      %657 = vmatpush.msra.mxu0 0.0
      %658 = vmatpush.msra.mxu0 0.0
      %659 = vmatpush.msra.mxu0 0.0
      %660 = vmatpush.msra.mxu0 %v641
      %661 = vmatmul.f32.gmra.mxu0 %v639
      %v662 = vpop.f32.mrf.mxu0
      %v663 = vadd.f32 0.0, %v662
      %664 = vdwg.mxu0
      %665 = vmatpush.msra.mxu0 0.0
      %666 = vmatpush.msra.mxu0 0.0
      %667 = vmatpush.msra.mxu0 0.0
      %668 = vmatpush.msra.mxu0 0.0
      %669 = vmatpush.msra.mxu0 0.0
      %670 = vmatpush.msra.mxu0 0.0
      %671 = vmatpush.msra.mxu0 0.0
      %672 = vmatpush.msra.mxu0 0.0
      %673 = vmatpush.msra.mxu0 0.0
      %674 = vmatpush.msra.mxu0 0.0
      %675 = vmatpush.msra.mxu0 0.0
      %676 = vmatpush.msra.mxu0 0.0
      %677 = vmatpush.msra.mxu0 0.0
      %678 = vmatpush.msra.mxu0 0.0
      %679 = vmatpush.msra.mxu0 0.0
      %680 = vmatpush.msra.mxu0 %v643
      %681 = vmatmul.f32.gmra.mxu0 %v639
      %v682 = vpop.f32.mrf.mxu0
      %v683 = vadd.f32 0.0, %v682
      %684 = vdwg.mxu0
      %v685 = vadd.f32 %v621, %v663
      %v686 = vadd.f32 %v622, %v683
      %687 = vst [vmem:[#allocation1] ss:$2 sm:$0xff] %v185
      %s688 = scalar_lea.vmem [#allocation1], 16
      %689 = vst [vmem:[%s688] ss:$2 sm:$0xff] %v186
      %v690 = vld.sshfl [vmem:[#allocation1] sm:$0xff pattern:$0x75316420]
      %v691 = vld.sshfl [vmem:[#allocation1 + $0x8] sm:$0xff pattern:$0x75316420]
      %v692 = vld.sshfl [vmem:[#allocation1 + $0x10] sm:$0xff pattern:$0x75316420]
      %693 = vrot.lane.b32.xlu0 %v690, 94
      %v694 = vpop.permute.xlu0 %693
      %695 = vrot.lane.b32.xlu0 %v691, 94
      %v696 = vpop.permute.xlu0 %695
      %697 = vrot.lane.b32.xlu0 %v692, 94
      %v698 = vpop.permute.xlu0 %697
      %vm699 = vcmask 769024
      %v700 = vsel %vm699, %v694, %v696
      %v701 = vsel %vm699, %v696, %v698
      %v703 = vsel %vm204, %v183, 0
      %v705 = vsel %vm208, %v700, 0
      %v707 = vsel %vm208, %v701, 0
      %709 = vmatpush.msra.mxu0 0.0
      %710 = vmatpush.msra.mxu0 0.0
      %711 = vmatpush.msra.mxu0 0.0
      %712 = vmatpush.msra.mxu0 0.0
      %713 = vmatpush.msra.mxu0 0.0
      %714 = vmatpush.msra.mxu0 0.0
      %715 = vmatpush.msra.mxu0 0.0
      %716 = vmatpush.msra.mxu0 0.0
      %717 = vmatpush.msra.mxu0 0.0
      %718 = vmatpush.msra.mxu0 0.0
      %719 = vmatpush.msra.mxu0 0.0
      %720 = vmatpush.msra.mxu0 0.0
      %721 = vmatpush.msra.mxu0 0.0
      %722 = vmatpush.msra.mxu0 0.0
      %723 = vmatpush.msra.mxu0 0.0
      %724 = vmatpush.msra.mxu0 %v705
      %725 = vmatmul.f32.gmra.mxu0 %v703
      %v726 = vpop.f32.mrf.mxu0
      %v727 = vadd.f32 0.0, %v726
      %728 = vdwg.mxu0
      %729 = vmatpush.msra.mxu0 0.0
      %730 = vmatpush.msra.mxu0 0.0
      %731 = vmatpush.msra.mxu0 0.0
      %732 = vmatpush.msra.mxu0 0.0
      %733 = vmatpush.msra.mxu0 0.0
      %734 = vmatpush.msra.mxu0 0.0
      %735 = vmatpush.msra.mxu0 0.0
      %736 = vmatpush.msra.mxu0 0.0
      %737 = vmatpush.msra.mxu0 0.0
      %738 = vmatpush.msra.mxu0 0.0
      %739 = vmatpush.msra.mxu0 0.0
      %740 = vmatpush.msra.mxu0 0.0
      %741 = vmatpush.msra.mxu0 0.0
      %742 = vmatpush.msra.mxu0 0.0
      %743 = vmatpush.msra.mxu0 0.0
      %744 = vmatpush.msra.mxu0 %v707
      %745 = vmatmul.f32.gmra.mxu0 %v703
      %v746 = vpop.f32.mrf.mxu0
      %v747 = vadd.f32 0.0, %v746
      %748 = vdwg.mxu0
      %v749 = vadd.f32 %v685, %v727
      %v750 = vadd.f32 %v686, %v747
      %752 = vset.pattern.permute.xlu0 0
      %753 = vperm.xlu0 %752, %v184
      %v754 = vpop.permute.xlu0 %753
      %v756 = vadd.f32 %v749, %v754
      %v757 = vadd.f32 %v750, %v754
      %758 = vst [vmem:[%s170] sm:$0x3f] %v756
      %759 = vst [vmem:[%s170 + $0x8] sm:$0x3f] %v757
      %p760 = scmp.lt.s32.totalorder %s14, 1
      %s761 = scalar_select %p760, %s14, 1
      %s762 = smul.addr %s761, 2
      %s763 = smul.addr %s762, 8
      %s764 = scalar_lea.vmem %s3, %s763
      // Predicated region
      $region33: #{tpu_custom_call.1} parent=31 // pred_check
        %p765 = pneg %p100
      $region34: #{tpu_custom_call.1} parent=31 // pred_check_branch
        %767 = sbr.rel (%p765) target = $region36
      $region35: #{tpu_custom_call.1} parent=31 // pred_region
        _
      $region36: #{tpu_custom_call.1} parent=31 // pred_fallthru
        _
    $region32: #{tpu_custom_call.1} parent=5 // pred_fallthru
      _
    %p768 = scmp.le.s32.totalorder 2, %s9
    // Predicated region
    $region37: #{tpu_custom_call.1} parent=5 // pred_check
      %p769 = pneg %p768
    $region38: #{tpu_custom_call.1} parent=5 // pred_check_branch
      %771 = sbr.rel (%p769) target = $region40
    $region39: #{tpu_custom_call.1} parent=5 // pred_region
      %s772 = ssub.s32 %s9, 2
      // Predicated region
      $region41: #{tpu_custom_call.1} parent=39 // pred_check
        %p773 = pneg %p106
      $region42: #{tpu_custom_call.1} parent=39 // pred_check_branch
        %775 = sbr.rel (%p773) target = $region44
      $region43: #{tpu_custom_call.1} parent=39 // pred_region
        %p776 = scmp.lt.s32.totalorder %s15, 1
        %s777 = scalar_select %p776, %s15, 1
        %s778 = smul.addr %s777, 2
        %s779 = smul.addr %s778, 8
        %s780 = scalar_lea.vmem %s3, %s779
      $region44: #{tpu_custom_call.1} parent=39 // pred_fallthru
        _
    $region40: #{tpu_custom_call.1} parent=5 // pred_fallthru
      _
  $region6: #{tpu_custom_call.1} parent=0 // loop_footer
    %s13 = sadd.s32 1, %s9
  $region7: #{tpu_custom_call.1} parent=0 // loop_footer_branch
    %8 = sbr.rel target = $region3
  $region8: #{tpu_custom_call.1} parent=0 // loop_exit
    _

</llo_original>
